<compile_context>
chip_gen: v6e
topology: v6e:2x2x1
jax: 0.10.0
libtpu: 0.0.40
codegen_flags: <defaults>
</compile_context>

<pallas_src>
import math
import functools
import numpy as np

import jax
import jax.numpy as jnp
from jax.experimental import pallas as pl
from jax.experimental.pallas import tpu as pltpu

# ---- FLIF constants (match the PyTorch module) --------------------------------
DT = 0.1
THRESHOLD = -50.0
V_INIT = -70.0
VL = -70.0
V_RESET = -70.0
GL = 0.0025
CM = 0.5

LANE = 128
SUBLANE = 8


# ---- Fused Pallas kernel: whole sequence, one neuron block per grid column ----
def _flif_fused_kernel(i_ref, spike_ref, v_ref, v_state, *, alpha):
    """Grid = (neuron block b, timestep t).  Per-step shapes (R = tile sublane rows):
         i_ref, spike_ref, v_ref : (R, 128) blocks streamed per (b, t)
         v_state                 : (R, 128) f32 VMEM scratch carrying V across t
    """
    t = pl.program_id(1)

    # --- timestep 0 (N == 0): constants out, initialize carried state ----------
    @pl.when(t == 0)
    def _init():
        v0 = jnp.full(v_state.shape, V_INIT, jnp.float32)
        spike_ref[...] = jnp.zeros_like(spike_ref)
        v_ref[...] = v0
        v_state[...] = v0

    # --- timesteps >= 1: leaky / fractional update + spike + reset -------------
    @pl.when(t >= 1)
    def _step():
        I = i_ref[...]
        V_old = v_state[...]

        # Both branches are V_new = V_old + a*(VL - V_old) + b*I with scalar (a, b):
        #   t == 1 : a = dt*gl/Cm                        b = dt/Cm
        #   t >= 2 : a = dt^alpha*Gamma(2-alpha)*gl/Cm   b = dt^alpha*Gamma(2-alpha)/Cm
        # TODO(synk): the reference's memory_V = delta_trace @ weight_vector is dead code
        # (never used by any forward output), so it is intentionally not computed here.
        c2 = (DT ** alpha) * math.gamma(2.0 - alpha) / CM
        a = jnp.where(t == 1, jnp.float32(DT * GL / CM), jnp.float32(c2 * GL))
        b = jnp.where(t == 1, jnp.float32(DT / CM), jnp.float32(c2))
        V_new = V_old + a * (VL - V_old) + b * I

        # spike = (V_old - threshold > 0); reset folds into one select.
        fired = (V_old - THRESHOLD) > 0.0
        V_new = jnp.where(fired, jnp.float32(V_RESET), V_new)

        spike_ref[...] = fired.astype(spike_ref.dtype)
        v_ref[...] = V_new
        v_state[...] = V_new


# ---- Wrapper mimicking the PyTorch module (fused over the whole sequence) -----
class FLIFNeuronPallas:
    def __init__(self, size, num_steps, alpha, *, max_tile_rows=512):
        self.size = size
        self.num_steps = num_steps
        self.alpha = alpha
        self.N = 0

        # Kept for API parity with the PyTorch class attribute; the fractional memory
        # term that consumes it never reaches the reference output, so the kernel skips it.
        x = num_steps
        nv = np.arange(x - 1)
        self.weight_vector = (
            (x + 1 - nv) ** (1.0 - alpha) - (x - nv) ** (1.0 - alpha)
        ).astype(np.float32)

        # Neuron axis padded to full (8, 128) f32 tiles, packed lane- and sublane-dense.
        self.padded_size = -(-size // (SUBLANE * LANE)) * (SUBLANE * LANE)
        self.rows = self.padded_size // LANE                 # multiple of 8
        self.tile_rows = self._pick_tile(self.rows, max_tile_rows)
        self.n_blocks = self.rows // self.tile_rows
        # Spikes stream in bf16 when the tile respects bf16 (16, 128) tiling, else f32.
        self.spike_dtype = jnp.bfloat16 if self.tile_rows % 16 == 0 else jnp.float32

        self._Vs = None   # (T, size) post-reset membrane potentials, time-major
        self._delta_trace = jnp.zeros((size, num_steps), jnp.float32)

    @staticmethod
    def _pick_tile(rows, max_tile_rows):
        # Largest multiple-of-8 divisor of `rows` that is <= max_tile_rows, preferring
        # >= 2 neuron blocks so the parallel axis shards across both v7x TensorCores.
        cap = max(SUBLANE, (min(rows, max_tile_rows) // SUBLANE) * SUBLANE)
        candidates = [c for c in range(cap, SUBLANE - 1, -SUBLANE) if rows % c == 0]
        if not candidates:
            return SUBLANE
        if rows >= 2 * SUBLANE:
            for c in candidates:
                if rows // c >= 2:
                    return c
        return candidates[0]

    # --- PyTorch-API parity helpers -------------------------------------------
    def init_mem(self):
        self.N = 0
        return jnp.zeros((self.size,), jnp.float32)

    def reset_memory(self):
        self._Vs = None
        self._delta_trace = jnp.zeros((self.size, self.num_steps), jnp.float32)
        self.N = 0

    @property
    def delta_trace(self):
        # Lazy: delta_trace[:, t-1] == Vs[t] - Vs[t-1] (both post-reset); the last column
        # is never written by the reference and stays zero.  Only materialized on access,
        # avoiding an extra full T*size HBM round trip (plus a transpose) per forward.
        if self._delta_trace is None:
            d = self._Vs[1:] - self._Vs[:-1]                                  # (T-1, size)
            d = jnp.concatenate([d, jnp.zeros((1, self.size), jnp.float32)], axis=0)
            self._delta_trace = d.T                                           # (size, T)
        return self._delta_trace

    @delta_trace.setter
    def delta_trace(self, value):
        self._delta_trace = value

    # --- fused forward over the whole sequence ---------------------------------
    def forward_sequence(self, I_seq):
        """I_seq: (num_steps, size).  Returns (spikes, Vs), each (num_steps, size).
        The first step ignores any initial V (the reference returns V_init there)."""
        I_seq = jnp.asarray(I_seq, jnp.float32)
        T, size = I_seq.shape
        assert T == self.num_steps and size == self.size
        pad = self.padded_size - size
        if pad:
            I_seq = jnp.pad(I_seq, ((0, 0), (0, pad)))
        I3 = I_seq.reshape(T, self.rows, LANE)

        tr = self.tile_rows
        per_step = lambda b, t: (t, b, 0)   # one (tr, 128) slab per (neuron block, step)
        kernel = functools.partial(_flif_fused_kernel, alpha=self.alpha)

        # Explicit VMEM budget: double-buffered per-step I/V/spike blocks + carried V
        # scratch, 4x headroom, capped well below v7x's 64 MiB physical VMEM.
        spike_bytes = jnp.dtype(self.spike_dtype).itemsize
        per_step_bytes = tr * LANE * (4 + 4 + spike_bytes)
        vmem_limit = int(min(max(4 * (2 * per_step_bytes + tr * LANE * 4), 8 << 20), 48 << 20))

        spikes, Vs = pl.pallas_call(
            kernel,
            grid=(self.n_blocks, T),                               # (neuron blocks, timesteps)
            in_specs=[pl.BlockSpec((None, tr, LANE), per_step)],   # I[t]
            out_specs=[
                pl.BlockSpec((None, tr, LANE), per_step),          # spikes[t]
                pl.BlockSpec((None, tr, LANE), per_step),          # V[t]
            ],
            out_shape=[
                jax.ShapeDtypeStruct((T, self.rows, LANE), self.spike_dtype),
                jax.ShapeDtypeStruct((T, self.rows, LANE), jnp.float32),
            ],
            scratch_shapes=[pltpu.VMEM((tr, LANE), jnp.float32)],  # carried membrane potential
            compiler_params=pltpu.CompilerParams(
                dimension_semantics=("parallel", "arbitrary"),
                vmem_limit_bytes=vmem_limit),
        )(I3)

        spikes = spikes.reshape(T, self.padded_size)
        Vs = Vs.reshape(T, self.padded_size)
        if pad:                                 # slice only when padding exists
            spikes = spikes[:, :size]
            Vs = Vs[:, :size]
        self._Vs = Vs
        self._delta_trace = None                # recomputed lazily from Vs on access
        self.N = T
        return spikes, Vs


# ---- Pure NumPy reference (direct transcription of the PyTorch forward) -------
def flif_reference(I_seq, size, num_steps, alpha):
    N = 0
    V = np.zeros(size, np.float32)
    delta_trace = np.zeros((size, num_steps), np.float32)
    spikes, Vs = [], []
    for t in range(num_steps):
        I = I_seq[t].astype(np.float32)
        V_old = V
        if N == 0:
            V_new = np.full_like(V_old, V_INIT)
            spike = np.zeros_like(V_old)
            N += 1
            spikes.append(spike); Vs.append(V_new); V = V_new
            continue
        elif N == 1:
            tau = CM / GL
            V_new = V_old + DT / tau * (-1.0 * (V_old - VL) + I / GL)
        else:
            V_new = (DT ** alpha) * math.gamma(2.0 - alpha) * (-GL * (V_old - VL) + I) / CM + V_old
            # memory_V computed but unused in the reference module
        spike = (V_old - THRESHOLD > 0).astype(np.float32)
        V_new = V_new - spike * (V_new - V_RESET)
        delta_trace[:, N - 1] = V_new - V_old
        N += 1
        spikes.append(spike); Vs.append(V_new); V = V_new
    return np.stack(spikes), np.stack(Vs), delta_trace


if __name__ == "__main__":
    size = 1024       # layer_size: 8 sublanes x 128 lanes -> one dense f32 tile
    num_steps = 8
    alpha = 0.2

    key = jax.random.PRNGKey(0)
    # Input currents strong enough to drive spiking with a comfortable threshold margin.
    I_seq = jax.random.uniform(key, (num_steps, size), jnp.float32, 20.0, 30.0)

    neuron = FLIFNeuronPallas(size, num_steps, alpha)
    _V0 = neuron.init_mem()   # kept for API parity; the first step returns V_init regardless

    spikes, Vs = neuron.forward_sequence(I_seq)
    jax.block_until_ready((spikes, Vs))

    ref_spikes, ref_Vs, ref_delta = flif_reference(np.asarray(I_seq), size, num_steps, alpha)
    np.testing.assert_allclose(np.asarray(Vs), ref_Vs, rtol=1e-5, atol=1e-3)
    np.testing.assert_array_equal(np.asarray(spikes, dtype=np.float32), ref_spikes)
    np.testing.assert_allclose(np.asarray(neuron.delta_trace), ref_delta, rtol=1e-5, atol=1e-3)

    print("KERNEL_OK")
</pallas_src>

<mosaic_0001>
module attributes {stable_mosaic.version = 11 : i64} {
  func.func @_flif_fused_kernel(%arg0: i32, %arg1: i32, %arg2: memref<1x8x128xf32, #tpu.memory_space<vmem>>, %arg3: memref<1x8x128xf32, #tpu.memory_space<vmem>>, %arg4: memref<1x8x128xf32, #tpu.memory_space<vmem>>, %arg5: memref<8x128xf32, #tpu.memory_space<vmem>>) attributes {dimension_semantics = [#tpu.dimension_semantics<parallel>, #tpu.dimension_semantics<arbitrary>], iteration_bounds = array<i64: 1, 8>, scalar_prefetch = 0 : i64, scratch_operands = 1 : i64, tpu.core_type = #tpu.core_type<tc>, window_params = [{transform_indices = @transform_0, window_bounds = array<i64: 1, 8, 128>}, {transform_indices = @transform_1, window_bounds = array<i64: 1, 8, 128>}, {transform_indices = @transform_2, window_bounds = array<i64: 1, 8, 128>}]} {
    %c0_i32 = arith.constant 0 : i32
    %0 = arith.cmpi eq, %arg1, %c0_i32 : i32
    %1 = arith.extui %0 : i1 to i32
    %c0_i32_0 = arith.constant 0 : i32
    %2 = arith.cmpi ne, %1, %c0_i32_0 : i32
    scf.if %2 {
      %cst = arith.constant -7.000000e+01 : f32
      %6 = vector.broadcast %cst : f32 to vector<8x128xf32>
      %cst_2 = arith.constant 0.000000e+00 : f32
      %7 = vector.broadcast %cst_2 : f32 to vector<8x128xf32>
      %c0 = arith.constant 0 : index
      %c0_3 = arith.constant 0 : index
      %c0_4 = arith.constant 0 : index
      %8 = vector.load %arg3[%c0, %c0_3, %c0_4] : memref<1x8x128xf32, #tpu.memory_space<vmem>>, vector<1x8x128xf32>
      %9 = vector.shape_cast %8 : vector<1x8x128xf32> to vector<8x128xf32>
      %10 = vector.shape_cast %7 : vector<8x128xf32> to vector<1x8x128xf32>
      tpu.vector_store %arg3[%c0, %c0_3, %c0_4], %10 {strides = array<i32>} : memref<1x8x128xf32, #tpu.memory_space<vmem>>, vector<1x8x128xf32>,
      %c0_5 = arith.constant 0 : index
      %c0_6 = arith.constant 0 : index
      %c0_7 = arith.constant 0 : index
      %11 = vector.load %arg4[%c0_5, %c0_6, %c0_7] : memref<1x8x128xf32, #tpu.memory_space<vmem>>, vector<1x8x128xf32>
      %12 = vector.shape_cast %11 : vector<1x8x128xf32> to vector<8x128xf32>
      %13 = vector.shape_cast %6 : vector<8x128xf32> to vector<1x8x128xf32>
      tpu.vector_store %arg4[%c0_5, %c0_6, %c0_7], %13 {strides = array<i32>} : memref<1x8x128xf32, #tpu.memory_space<vmem>>, vector<1x8x128xf32>,
      %c0_8 = arith.constant 0 : index
      %c0_9 = arith.constant 0 : index
      %14 = vector.load %arg5[%c0_8, %c0_9] : memref<8x128xf32, #tpu.memory_space<vmem>>, vector<8x128xf32>
      tpu.vector_store %arg5[%c0_8, %c0_9], %6 {strides = array<i32>} : memref<8x128xf32, #tpu.memory_space<vmem>>, vector<8x128xf32>,
    } else {
    }
    %c1_i32 = arith.constant 1 : i32
    %3 = arith.cmpi sge, %arg1, %c1_i32 : i32
    %4 = arith.extui %3 : i1 to i32
    %c0_i32_1 = arith.constant 0 : i32
    %5 = arith.cmpi ne, %4, %c0_i32_1 : i32
    scf.if %5 {
      %c0 = arith.constant 0 : index
      %c0_2 = arith.constant 0 : index
      %c0_3 = arith.constant 0 : index
      %6 = vector.load %arg2[%c0, %c0_2, %c0_3] : memref<1x8x128xf32, #tpu.memory_space<vmem>>, vector<1x8x128xf32>
      %7 = vector.shape_cast %6 : vector<1x8x128xf32> to vector<8x128xf32>
      %c0_4 = arith.constant 0 : index
      %c0_5 = arith.constant 0 : index
      %8 = vector.load %arg5[%c0_4, %c0_5] : memref<8x128xf32, #tpu.memory_space<vmem>>, vector<8x128xf32>
      %c1_i32_6 = arith.constant 1 : i32
      %9 = arith.cmpi eq, %arg1, %c1_i32_6 : i32
      %cst = arith.constant 5.000000e-04 : f32
      %cst_7 = arith.constant 0.00293831713 : f32
      %10 = arith.select %9, %cst, %cst_7 : f32
      %c1_i32_8 = arith.constant 1 : i32
      %11 = arith.cmpi eq, %arg1, %c1_i32_8 : i32
      %cst_9 = arith.constant 2.000000e-01 : f32
      %cst_10 = arith.constant 1.17532682 : f32
      %12 = arith.select %11, %cst_9, %cst_10 : f32
      %cst_11 = arith.constant -7.000000e+01 : f32
      %13 = vector.broadcast %cst_11 : f32 to vector<8x128xf32>
      %14 = arith.subf %13, %8 : vector<8x128xf32>
      %15 = vector.broadcast %10 : f32 to vector<8x128xf32>
      %16 = arith.mulf %15, %14 : vector<8x128xf32>
      %17 = arith.addf %8, %16 : vector<8x128xf32>
      %18 = vector.broadcast %12 : f32 to vector<8x128xf32>
      %19 = arith.mulf %18, %7 : vector<8x128xf32>
      %20 = arith.addf %17, %19 : vector<8x128xf32>
      %cst_12 = arith.constant -5.000000e+01 : f32
      %21 = vector.broadcast %cst_12 : f32 to vector<8x128xf32>
      %22 = arith.subf %8, %21 : vector<8x128xf32>
      %cst_13 = arith.constant 0.000000e+00 : f32
      %23 = vector.broadcast %cst_13 : f32 to vector<8x128xf32>
      %24 = arith.cmpf ogt, %22, %23 : vector<8x128xf32>
      %cst_14 = arith.constant -7.000000e+01 : f32
      %25 = vector.broadcast %cst_14 : f32 to vector<8x128xf32>
      %26 = arith.select %24, %25, %20 : vector<8x128xi1>, vector<8x128xf32>
      %27 = arith.extui %24 : vector<8x128xi1> to vector<8x128xi32>
      %28 = arith.sitofp %27 : vector<8x128xi32> to vector<8x128xf32>
      %c0_15 = arith.constant 0 : index
      %c0_16 = arith.constant 0 : index
      %c0_17 = arith.constant 0 : index
      %29 = vector.load %arg3[%c0_15, %c0_16, %c0_17] : memref<1x8x128xf32, #tpu.memory_space<vmem>>, vector<1x8x128xf32>
      %30 = vector.shape_cast %29 : vector<1x8x128xf32> to vector<8x128xf32>
      %31 = vector.shape_cast %28 : vector<8x128xf32> to vector<1x8x128xf32>
      tpu.vector_store %arg3[%c0_15, %c0_16, %c0_17], %31 {strides = array<i32>} : memref<1x8x128xf32, #tpu.memory_space<vmem>>, vector<1x8x128xf32>,
      %c0_18 = arith.constant 0 : index
      %c0_19 = arith.constant 0 : index
      %c0_20 = arith.constant 0 : index
      %32 = vector.load %arg4[%c0_18, %c0_19, %c0_20] : memref<1x8x128xf32, #tpu.memory_space<vmem>>, vector<1x8x128xf32>
      %33 = vector.shape_cast %32 : vector<1x8x128xf32> to vector<8x128xf32>
      %34 = vector.shape_cast %26 : vector<8x128xf32> to vector<1x8x128xf32>
      tpu.vector_store %arg4[%c0_18, %c0_19, %c0_20], %34 {strides = array<i32>} : memref<1x8x128xf32, #tpu.memory_space<vmem>>, vector<1x8x128xf32>,
      %c0_21 = arith.constant 0 : index
      %c0_22 = arith.constant 0 : index
      %35 = vector.load %arg5[%c0_21, %c0_22] : memref<8x128xf32, #tpu.memory_space<vmem>>, vector<8x128xf32>
      tpu.vector_store %arg5[%c0_21, %c0_22], %26 {strides = array<i32>} : memref<8x128xf32, #tpu.memory_space<vmem>>, vector<8x128xf32>,
    } else {
    }
    return
  }
  func.func @transform_0(%arg0: i32, %arg1: i32) -> (i32, i32, i32) {
    %c0_i32 = arith.constant 0 : i32
    %c0_i32_0 = arith.constant 0 : i32
    return %arg1, %arg0, %c0_i32 : i32, i32, i32
  }
  func.func @transform_1(%arg0: i32, %arg1: i32) -> (i32, i32, i32) {
    %c0_i32 = arith.constant 0 : i32
    %c0_i32_0 = arith.constant 0 : i32
    return %arg1, %arg0, %c0_i32 : i32, i32, i32
  }
  func.func @transform_2(%arg0: i32, %arg1: i32) -> (i32, i32, i32) {
    %c0_i32 = arith.constant 0 : i32
    %c0_i32_0 = arith.constant 0 : i32
    return %arg1, %arg0, %c0_i32 : i32, i32, i32
  }
}

</mosaic_0001>

<llo_original>
// kernel: tpu_custom_call.1
$region0: #{tpu_custom_call.1}
  #allocation0 [shape = 'u32[]', space=smem, size = 0x4, offset = 0x4, fixed_abs, tag = 'smem constant byte address 0x4 - core index']
  #allocation1 [shape = 'u32[144,128]{1,0:T(1,128)}', space=vmem, size = 0x12000, scoped, tag = 'internal scratch']
  #allocation2 [shape = 'f32[8,128]{1,0:T(8,128)}', space=vmem, size = 0x1000, scoped, tag = 'scratch operand']
  %s0 = inlined_call_operand.hbm [shape: f32[8,8,128], index: 0, kind: input, shape index: {}]
  %s1 = inlined_call_operand.hbm [shape: f32[8,8,128], index: 1, kind: output, shape index: {0}]
  %s2 = inlined_call_operand.hbm [shape: f32[8,8,128], index: 2, kind: output, shape index: {1}]
  %3 = xla_tuple %s1, %s2
  %s4 = sld [smem:[#allocation0]]
  $region57: #{tpu_custom_call.1} parent=0
    _
  %s6 = ssub.s32 1, %s4
  %s7 = scalar_select 0, %s6, %s4
  $region1: #{tpu_custom_call.1} parent=0
    #allocation3 [shape = 'u8[8192]{0}', space=vmem, size = 0x2000, scoped, tag = 'input window, operand 0']
    #allocation4 [shape = 's32[2]{0}', space=sflag, size = 0x8, scoped, tag = 'scoped memory for tpu_custom_call.1']
    #allocation5 [shape = 's32[2]{0}', space=sflag, size = 0x8, scoped, tag = 'scoped memory for tpu_custom_call.1']
    #allocation6 [shape = 'u8[8192]{0}', space=vmem, size = 0x2000, scoped, tag = 'output window, operand 0']
    #allocation7 [shape = 'u8[8192]{0}', space=vmem, size = 0x2000, scoped, tag = 'output window, operand 1']
    #allocation8 [shape = 's32[2]{0}', space=sflag, size = 0x8, scoped, tag = 'scoped memory for tpu_custom_call.1']
    %8 = vsyncpa [#allocation4], 0
    %s9 = scalar_lea.sflag [#allocation4], 1
    %10 = vsyncpa %s9, 0
    %11 = vsyncpa [#allocation5], 0
    %s12 = scalar_lea.sflag [#allocation5], 1
    %13 = vsyncpa %s12, 0
    %14 = vsyncpa [#allocation8], 0
    %s15 = scalar_lea.sflag [#allocation8], 1
    %16 = vsyncpa %s15, 0
    loop: start=0, step=1, limit=10
    $region2: #{tpu_custom_call.1} parent=1 // loop_pre_header
      _
    $region3: #{tpu_custom_call.1} parent=1 // loop_header
      %s18 = sphi 0, %s22
      %p19 = scmp.ge.s32.totalorder %s18, 10
      %s25 = sphi 0, %s37
      %s26 = sphi 0, %s33
      %s27 = sphi 0, %s25
      %s28 = sphi 0, %s26
      %s29 = sphi 0, %s27
      %s30 = sphi 0, %s28
      %s42 = sphi 0, %s44
      %s45 = sphi 0, %s42
      %s46 = sphi 0, %s45
      %s62 = sphi 0, %s46
      %s70 = sphi 0, %s72
      %s73 = sphi 0, %s70
      %s74 = sphi 0, %s73
      %s90 = sphi 0, %s74
      %s98 = sphi 0, %s100
      %s101 = sphi 0, %s98
      %s102 = sphi 0, %s101
      %s118 = sphi 0, %s102
    $region4: #{tpu_custom_call.1} parent=1 // loop_header_branch
      %21 = sbr.rel (%p19) target = $region8
    $region5: #{tpu_custom_call.1} parent=1 // loop_body
      %s23 = ssub.s32 %s18, 1
      %s24 = ssub.s32 %s18, 2
      %s31 = sadd.s32 1, %s26
      %p32 = scmp.ge.s32.totalorder %s31, 8
      %s33 = scalar_select %p32, 0, %s31
      %s34 = sadd.s32 1, %s25
      %s35 = scalar_select %p32, %s34, %s25
      %p36 = scmp.ge.s32.totalorder %s35, 1
      %s37 = scalar_select %p36, 0, %s35
      %s38 = ssub.s32 %s26, %s33
      %s39 = ssub.s32 %s25, %s37
      %s40 = sor.u32 %s38, %s39
      %p41 = scmp.eq.s32.totalorder %s40, 0
      %s43 = sadd.s32 %s42, 1
      %s44 = scalar_select %p41, %s42, %s43
      %p47 = pneg %p41
      %p48 = scmp.eq.s32.totalorder %s18, 7
      %p49 = por %p47, %p48
      %p50 = scmp.ne.s32.totalorder %s42, %s45
      %p51 = scmp.eq.s32.totalorder %s18, 0
      %p52 = por %p50, %p51
      %p53 = scmp.ne.s32.totalorder %s42, %s45
      %p54 = scmp.eq.s32.totalorder %s23, 7
      %p55 = por %p53, %p54
      %p56 = scmp.ne.s32.totalorder %s45, %s46
      %p57 = scmp.eq.s32.totalorder %s23, 0
      %p58 = por %p56, %p57
      %p59 = scmp.ne.s32.totalorder %s45, %s46
      %p60 = scmp.eq.s32.totalorder %s24, 7
      %p61 = por %p59, %p60
      %p63 = scmp.ne.s32.totalorder %s46, %s62
      %p64 = scmp.eq.s32.totalorder %s24, 0
      %p65 = por %p63, %p64
      %s66 = ssub.s32 %s26, %s33
      %s67 = ssub.s32 %s25, %s37
      %s68 = sor.u32 %s66, %s67
      %p69 = scmp.eq.s32.totalorder %s68, 0
      %s71 = sadd.s32 %s70, 1
      %s72 = scalar_select %p69, %s70, %s71
      %p75 = pneg %p69
      %p76 = scmp.eq.s32.totalorder %s18, 7
      %p77 = por %p75, %p76
      %p78 = scmp.ne.s32.totalorder %s70, %s73
      %p79 = scmp.eq.s32.totalorder %s18, 0
      %p80 = por %p78, %p79
      %p81 = scmp.ne.s32.totalorder %s70, %s73
      %p82 = scmp.eq.s32.totalorder %s23, 7
      %p83 = por %p81, %p82
      %p84 = scmp.ne.s32.totalorder %s73, %s74
      %p85 = scmp.eq.s32.totalorder %s23, 0
      %p86 = por %p84, %p85
      %p87 = scmp.ne.s32.totalorder %s73, %s74
      %p88 = scmp.eq.s32.totalorder %s24, 7
      %p89 = por %p87, %p88
      %p91 = scmp.ne.s32.totalorder %s74, %s90
      %p92 = scmp.eq.s32.totalorder %s24, 0
      %p93 = por %p91, %p92
      %s94 = ssub.s32 %s26, %s33
      %s95 = ssub.s32 %s25, %s37
      %s96 = sor.u32 %s94, %s95
      %p97 = scmp.eq.s32.totalorder %s96, 0
      %s99 = sadd.s32 %s98, 1
      %s100 = scalar_select %p97, %s98, %s99
      %p103 = pneg %p97
      %p104 = scmp.eq.s32.totalorder %s18, 7
      %p105 = por %p103, %p104
      %p106 = scmp.ne.s32.totalorder %s98, %s101
      %p107 = scmp.eq.s32.totalorder %s18, 0
      %p108 = por %p106, %p107
      %p109 = scmp.ne.s32.totalorder %s98, %s101
      %p110 = scmp.eq.s32.totalorder %s23, 7
      %p111 = por %p109, %p110
      %p112 = scmp.ne.s32.totalorder %s101, %s102
      %p113 = scmp.eq.s32.totalorder %s23, 0
      %p114 = por %p112, %p113
      %p115 = scmp.ne.s32.totalorder %s101, %s102
      %p116 = scmp.eq.s32.totalorder %s24, 7
      %p117 = por %p115, %p116
      %p119 = scmp.ne.s32.totalorder %s102, %s118
      %p120 = scmp.eq.s32.totalorder %s24, 0
      %p121 = por %p119, %p120
      %p122 = scmp.le.s32.totalorder 1, %s18
      %p123 = scmp.lt.s32.totalorder %s18, 9
      %p124 = pnand %p122, %p123
      %p125 = pneg %p124
      // Predicated region
      $region9: #{tpu_custom_call.1} parent=5 // pred_check
        _
      $region10: #{tpu_custom_call.1} parent=5 // pred_check_branch
        %127 = sbr.rel (%p124) target = $region12
      $region11: #{tpu_custom_call.1} parent=5 // pred_region
        %s128 = ssub.s32 %s18, 1
      $region12: #{tpu_custom_call.1} parent=5 // pred_fallthru
        _
      %p129 = scmp.lt.s32.totalorder %s18, 8
      // Predicated region
      $region13: #{tpu_custom_call.1} parent=5 // pred_check
        %p130 = pneg %p129
      $region14: #{tpu_custom_call.1} parent=5 // pred_check_branch
        %132 = sbr.rel (%p130) target = $region16
      $region15: #{tpu_custom_call.1} parent=5 // pred_region
        // Predicated region
        $region17: #{tpu_custom_call.1} parent=15 // pred_check
          %p133 = pneg %p52
        $region18: #{tpu_custom_call.1} parent=15 // pred_check_branch
          %135 = sbr.rel (%p133) target = $region20
        $region19: #{tpu_custom_call.1} parent=15 // pred_region
          %s136 = sand.u32 %s42, 1
          %s137 = scalar_lea.sflag [#allocation4], %s136
          %s138 = sand.u32 %s42, 1
          %s139 = smul.addr %s138, 8
          %s140 = scalar_lea.vmem [#allocation3], %s139
          %s142 = ssub.s32 128, 128
          %143 = vsyncadd %s137, %s142
          %s144 = sadd.s32 %s25, %s26
          %s145 = smul.addr %s144, 128
          %s146 = scalar_lea.hbm %s0, %s145
          %s148 = sshll.u32 %s140, 4
          %s149 = int_to_ptr.vmem [resolvable:$true] %s148
          %151 = dma.hbm_to_vmem [thread:$0]  %s146, 128, %s149, %s137
        $region20: #{tpu_custom_call.1} parent=15 // pred_fallthru
          _
      $region16: #{tpu_custom_call.1} parent=5 // pred_fallthru
        _
      %p152 = scmp.le.s32.totalorder 1, %s18
      %p153 = scmp.lt.s32.totalorder %s18, 9
      %p154 = pnand %p152, %p153
      %p155 = pneg %p154
      // Predicated region
      $region21: #{tpu_custom_call.1} parent=5 // pred_check
        _
      $region22: #{tpu_custom_call.1} parent=5 // pred_check_branch
        %157 = sbr.rel (%p154) target = $region24
      $region23: #{tpu_custom_call.1} parent=5 // pred_region
        %s158 = ssub.s32 %s18, 1
        %s159 = sand.u32 %s45, 1
        %s160 = scalar_lea.sflag [#allocation4], %s159
        %s161 = sand.u32 %s45, 1
        %s162 = smul.addr %s161, 8
        %s163 = scalar_lea.vmem [#allocation3], %s162
        // Predicated region
        $region25: #{tpu_custom_call.1} parent=23 // pred_check
          %p164 = pneg %p58
        $region26: #{tpu_custom_call.1} parent=23 // pred_check_branch
          %166 = sbr.rel (%p164) target = $region28
        $region27: #{tpu_custom_call.1} parent=23 // pred_region
          %167 = dma.done %s160, 128
        $region28: #{tpu_custom_call.1} parent=23 // pred_fallthru
          _
        %s168 = sand.u32 %s45, 1
        %s169 = scalar_lea.sflag [#allocation4], %s168
        %s170 = sand.u32 %s45, 1
        %s171 = smul.addr %s170, 8
        %s172 = scalar_lea.vmem [#allocation3], %s171
        %p173 = pneg %p58
        %p174 = pneg %p55
        %p175 = pneg %p86
        %p176 = pneg %p83
        %s177 = sand.u32 %s73, 1
        %s178 = scalar_lea.sflag [#allocation5], %s177
        %s179 = sand.u32 %s73, 1
        %s180 = smul.addr %s179, 8
        %s181 = scalar_lea.vmem [#allocation6], %s180
        %p182 = pneg %p114
        %p183 = pneg %p111
        %s184 = sand.u32 %s101, 1
        %s185 = scalar_lea.sflag [#allocation8], %s184
        %s186 = sand.u32 %s101, 1
        %s187 = smul.addr %s186, 8
        %s188 = scalar_lea.vmem [#allocation7], %s187
        %p189 = scmp.eq.s32.totalorder %s28, 0
        // Predicated region
        $region29: #{tpu_custom_call.1} parent=23 // pred_check
          %p190 = pneg %p189
        $region30: #{tpu_custom_call.1} parent=23 // pred_check_branch
          %192 = sbr.rel (%p190) target = $region32
        $region31: #{tpu_custom_call.1} parent=23 // pred_region
          %193 = vst [vmem:[%s181] sm:$0xff] 0.0
          %194 = vst [vmem:[%s188] sm:$0xff] -70.0
          %195 = vst [vmem:[#allocation2] sm:$0xff] -70.0
        $region32: #{tpu_custom_call.1} parent=23 // pred_fallthru
          _
        %p196 = scmp.ge.s32.totalorder %s28, 1
        // Predicated region
        $region33: #{tpu_custom_call.1} parent=23 // pred_check
          %p197 = pneg %p196
        $region34: #{tpu_custom_call.1} parent=23 // pred_check_branch
          %199 = sbr.rel (%p197) target = $region36
        $region35: #{tpu_custom_call.1} parent=23 // pred_region
          %v200 = vld [vmem:[%s163] sm:$0xff]
          %v201 = vld [vmem:[#allocation2] sm:$0xff]
          %p202 = scmp.eq.s32.totalorder %s28, 1
          %s203 = scalar_select %p202, 0.0005, 0.0029383171
          %s204 = scalar_select %p202, 0.2, 1.1753268
          %v205 = vsub.f32 -70.0, %v201
          %v206 = vstv %s203
          %v207 = vmul.f32 %v206, %v205
          %v208 = vadd.f32 %v201, %v207
          %v209 = vstv %s204
          %v210 = vmul.f32 %v209, %v200
          %v211 = vadd.f32 %v208, %v210
          %v212 = vsub.f32 %v201, -50.0
          %vm213 = vcmp.gt.f32.partialorder %v212, 0.0
          %v214 = vsel %vm213, -70.0, %v211
          %v215 = vsel %vm213, 1, 0
          %v216 = vcvt.s32.f32 %v215
          %217 = vst [vmem:[%s181] sm:$0xff] %v216
          %218 = vst [vmem:[%s188] sm:$0xff] %v214
          %219 = vst [vmem:[#allocation2] sm:$0xff] %v214
        $region36: #{tpu_custom_call.1} parent=23 // pred_fallthru
          _
        %s220 = sand.u32 %s73, 1
        %s221 = scalar_lea.sflag [#allocation5], %s220
        %s222 = sand.u32 %s73, 1
        %s223 = smul.addr %s222, 8
        %s224 = scalar_lea.vmem [#allocation6], %s223
        %s225 = sand.u32 %s101, 1
        %s226 = scalar_lea.sflag [#allocation8], %s225
        %s227 = sand.u32 %s101, 1
        %s228 = smul.addr %s227, 8
        %s229 = scalar_lea.vmem [#allocation7], %s228
        // Predicated region
        $region37: #{tpu_custom_call.1} parent=23 // pred_check
          %p230 = pneg %p83
        $region38: #{tpu_custom_call.1} parent=23 // pred_check_branch
          %232 = sbr.rel (%p230) target = $region40
        $region39: #{tpu_custom_call.1} parent=23 // pred_region
          %s234 = ssub.s32 128, 128
          %235 = vsyncadd %s221, %s234
          %s236 = sadd.s32 %s27, %s28
          %s237 = smul.addr %s236, 128
          %s238 = scalar_lea.hbm %s1, %s237
          %s240 = sshll.u32 %s224, 4
          %s241 = int_to_ptr.vmem [resolvable:$true] %s240
          %243 = dma.vmem_to_hbm [thread:$0]  %s241, 128, %s238, %s221
        $region40: #{tpu_custom_call.1} parent=23 // pred_fallthru
          _
        // Predicated region
        $region41: #{tpu_custom_call.1} parent=23 // pred_check
          %p244 = pneg %p111
        $region42: #{tpu_custom_call.1} parent=23 // pred_check_branch
          %246 = sbr.rel (%p244) target = $region44
        $region43: #{tpu_custom_call.1} parent=23 // pred_region
          %s248 = ssub.s32 128, 128
          %249 = vsyncadd %s226, %s248
          %s250 = sadd.s32 %s27, %s28
          %s251 = smul.addr %s250, 128
          %s252 = scalar_lea.hbm %s2, %s251
          %s254 = sshll.u32 %s229, 4
          %s255 = int_to_ptr.vmem [resolvable:$true] %s254
          %257 = dma.vmem_to_hbm [thread:$0]  %s255, 128, %s252, %s226
        $region44: #{tpu_custom_call.1} parent=23 // pred_fallthru
          _
      $region24: #{tpu_custom_call.1} parent=5 // pred_fallthru
        _
      %p258 = scmp.le.s32.totalorder 2, %s18
      // Predicated region
      $region45: #{tpu_custom_call.1} parent=5 // pred_check
        %p259 = pneg %p258
      $region46: #{tpu_custom_call.1} parent=5 // pred_check_branch
        %261 = sbr.rel (%p259) target = $region48
      $region47: #{tpu_custom_call.1} parent=5 // pred_region
        %s262 = ssub.s32 %s18, 2
        // Predicated region
        $region49: #{tpu_custom_call.1} parent=47 // pred_check
          %p263 = pneg %p89
        $region50: #{tpu_custom_call.1} parent=47 // pred_check_branch
          %265 = sbr.rel (%p263) target = $region52
        $region51: #{tpu_custom_call.1} parent=47 // pred_region
          %s266 = sand.u32 %s74, 1
          %s267 = scalar_lea.sflag [#allocation5], %s266
          %s268 = sand.u32 %s74, 1
          %s269 = smul.addr %s268, 8
          %s270 = scalar_lea.vmem [#allocation6], %s269
          %271 = dma.done %s267, 128
        $region52: #{tpu_custom_call.1} parent=47 // pred_fallthru
          _
        // Predicated region
        $region53: #{tpu_custom_call.1} parent=47 // pred_check
          %p272 = pneg %p117
        $region54: #{tpu_custom_call.1} parent=47 // pred_check_branch
          %274 = sbr.rel (%p272) target = $region56
        $region55: #{tpu_custom_call.1} parent=47 // pred_region
          %s275 = sand.u32 %s102, 1
          %s276 = scalar_lea.sflag [#allocation8], %s275
          %s277 = sand.u32 %s102, 1
          %s278 = smul.addr %s277, 8
          %s279 = scalar_lea.vmem [#allocation7], %s278
          %280 = dma.done %s276, 128
        $region56: #{tpu_custom_call.1} parent=47 // pred_fallthru
          _
      $region48: #{tpu_custom_call.1} parent=5 // pred_fallthru
        _
    $region6: #{tpu_custom_call.1} parent=1 // loop_footer
      %s22 = sadd.s32 1, %s18
    $region7: #{tpu_custom_call.1} parent=1 // loop_footer_branch
      %17 = sbr.rel target = $region3
    $region8: #{tpu_custom_call.1} parent=1 // loop_exit
      _
    %281 = vsyncpa [#allocation4], 1
    %s282 = scalar_lea.sflag [#allocation4], 1
    %283 = vsyncpa %s282, 1
    %284 = vsyncpa [#allocation5], 1
    %s285 = scalar_lea.sflag [#allocation5], 1
    %286 = vsyncpa %s285, 1
    %287 = vsyncpa [#allocation8], 1
    %s288 = scalar_lea.sflag [#allocation8], 1
    %289 = vsyncpa %s288, 1

</llo_original>
